<compile_context>
chip_gen: v7x
topology: tpu7x:2x2x1
jax: 0.10.0
libtpu: 0.0.40
codegen_flags: <defaults>
</compile_context>

<pallas_src>
import numpy as np
import jax
import jax.numpy as jnp
from jax.experimental import pallas as pl
from jax.experimental.pallas import tpu as pltpu

GN_EPS = 1e-5


def _sa_kernel(xa_ref, xb_ref, p_ref, o_ref):
    """One (batch-tile, channel-tile) grid step.

    xa_ref : (BB, 1, HALF, HW)  source channels [ci*HALF, (ci+1)*HALF)          (shuffle half 0)
    xb_ref : (BB, 1, HALF, HW)  source channels c//2 + [ci*HALF, (ci+1)*HALF)   (shuffle half 1)
    p_ref  : (6, HALF, 1)       folded gate params: rows 0..2 = (a, m, cst) half 0,
                                rows 3..5 = (a, m, cst) half 1  (f32)
    o_ref  : (BB, 2*HALF, HW)   final (channel-shuffled) channels [ci*2*HALF, (ci+1)*2*HALF)
    """
    bb, _, half, hw = xa_ref.shape
    inv_hw = 1.0 / float(hw)

    def gated(x, a, m, cst):
        # Row statistics accumulated in f32 regardless of I/O dtype
        # (single pass, biased variance, matching PyTorch GroupNorm).
        s1 = jnp.sum(x, axis=-1, keepdims=True, dtype=jnp.float32) * inv_hw       # mean
        s2 = jnp.sum(x * x, axis=-1, keepdims=True, dtype=jnp.float32) * inv_hw   # E[x^2]
        var = jnp.maximum(s2 - s1 * s1, 0.0)
        inv_std = jax.lax.rsqrt(var + GN_EPS)
        # gate = sigmoid(a*inv_std*(x - mu) + m*mu + cst)
        #      = 0.5*tanh(kh*x + bh) + 0.5      (tanh -> EUP slot; no VPU divide)
        # with the per-row affine folded once: k = a*inv_std, b = cst + m*mu - k*mu.
        k = a * inv_std                                  # (BB, HALF, 1) f32
        bias = cst + m * s1 - k * s1
        kh = (0.5 * k).astype(x.dtype)                   # per-element math stays in the
        bh = (0.5 * bias).astype(x.dtype)                # I/O dtype (bf16 on v6e/v7x)
        gate = jnp.tanh(kh * x + bh) * 0.5 + 0.5
        return (x * gate).astype(o_ref.dtype)

    ya = gated(xa_ref[:, 0], p_ref[0], p_ref[1], p_ref[2])    # (BB, HALF, HW)
    yb = gated(xb_ref[:, 0], p_ref[3], p_ref[4], p_ref[5])    # (BB, HALF, HW)

    # channel_shuffle(., 2) fused into the output layout: interleave the two halves
    # along the sublane (channel) axis in-register (XLU shuffle) and write the whole
    # block with a single full store (no mid-vreg lane offsets).
    o_ref[...] = jnp.stack([ya, yb], axis=2).reshape(bb, 2 * half, hw)


def _fold_gate_params(params, c, groups):
    """Fold (cweight, cbias, sweight, sbias, gn_weight, gn_bias) into per source-channel
    (a, m, cst) so that gate = sigmoid(a*inv_std*(x - mu) + m*mu + cst):
        channel-attention rows: a = 0,                 m = cweight, cst = cbias
        spatial / GN rows:      a = sweight*gn_weight, m = 0,       cst = sweight*gn_bias + sbias
    Returns ONE (6, c//2, 1) f32 array: rows 0..2 for shuffle half 0 (source channels
    [0, c//2)), rows 3..5 for half 1 (source channels [c//2, c))."""
    cpg = c // groups               # channels per (batch*group) slice
    ch = cpg // 2                   # = channel // (2*groups)
    cw = params["cweight"].reshape(-1).astype(jnp.float32)
    cb = params["cbias"].reshape(-1).astype(jnp.float32)
    sw = params["sweight"].reshape(-1).astype(jnp.float32)
    sb = params["sbias"].reshape(-1).astype(jnp.float32)
    gw = params["gn_weight"].reshape(-1).astype(jnp.float32)
    gb = params["gn_bias"].reshape(-1).astype(jnp.float32)

    j = jnp.arange(cpg)
    k = j % ch                      # within-branch parameter index
    is_cattn = j < ch               # first half of each group -> channel-attention branch
    a_g = jnp.where(is_cattn, 0.0, (sw * gw)[k])
    m_g = jnp.where(is_cattn, cw[k], 0.0)
    c_g = jnp.where(is_cattn, cb[k], (sw * gb + sb)[k])
    p = jnp.tile(jnp.stack([a_g, m_g, c_g], axis=0), (1, groups))     # (3, c), source order
    p6 = jnp.concatenate([p[:, : c // 2], p[:, c // 2:]], axis=0)     # (6, c//2)
    return p6[..., None]                                              # (6, c//2, 1)


def _vmem_limit_bytes():
    """Generation-aware scoped-VMEM limit (128 MiB physical on v5e/v6e, 64 MiB on v7x)."""
    try:
        cap = int(pltpu.get_tpu_info().vmem_capacity_bytes)
    except Exception:
        cap = 64 * 1024 * 1024                     # conservative fallback (v7x per-core)
    return max(32 * 1024 * 1024, min(cap - (16 << 20), (3 * cap) // 4))


def _pick_tiles(b, c_half, hw, itemsize, budget_bytes):
    """Choose (batch block BB, channel-half block HALF).

    * HALF is a dtype-aware sublane-aligned divisor of c//2 (8 rows f32 / 16 bf16 /
      32 int8) or the full c//2 extent (a full-extent block is always legal).
    * BB grows when channels/spatial are small so each step still moves ~MiBs
      (amortizes the ~0.35 us per-grid-step overhead).
    * A conservative double-buffered footprint estimate must fit the VMEM budget.
    * Above ~1 MiB/step, prefer configurations with >= 2 grid steps (v7x megacore).
    """
    align = max(8, 32 // itemsize)
    halves = [d for d in range(align, c_half + 1, align) if c_half % d == 0]
    if c_half not in halves:
        halves.append(c_half)
    bbs = [d for d in range(1, b + 1) if b % d == 0]

    def footprint(bb, half):
        elems = bb * half * hw
        # 2x double-buffered (xa + xb + out) in I/O dtype + ~6 f32-sized kernel temps.
        return elems * (8 * itemsize + 24) + 2 * 6 * half * 4

    min_par_tile = 1 << 20
    best_key, best = None, None
    for half in halves:
        for bb in bbs:
            if footprint(bb, half) > budget_bytes:
                continue
            tile_bytes = bb * half * hw * itemsize
            steps = (b // bb) * (c_half // half)
            key = (steps >= 2 and tile_bytes >= min_par_tile, tile_bytes, bb)
            if best_key is None or key > best_key:
                best_key, best = key, (bb, half)
    if best is None:
        # Even the smallest legal tile exceeds the budget; take it anyway (may spill).
        # TODO(synk): add a spatial (hw) grid axis with two-pass statistics for feature
        # maps too large to hold a single per-channel row tile in VMEM.
        return 1, min(halves)
    return best


def sa_layer_forward(x, params, groups):
    """Shuffle-Attention forward.  x: (b, c, h, w) NCHW with c % (2*groups) == 0."""
    b, c, h, w = x.shape
    if c % (2 * groups) != 0:
        raise ValueError("channel must be divisible by 2*groups")
    hw = h * w
    c_half = c // 2

    vmem_limit = _vmem_limit_bytes()
    bb, half = _pick_tiles(b, c_half, hw, x.dtype.itemsize, vmem_limit - (4 << 20))
    tb = 2 * half
    grid = (b // bb, c_half // half)

    p6 = _fold_gate_params(params, c, groups)      # single merged param pipeline
    x4 = x.reshape(b, 2, c_half, hw)               # free view: exposes the shuffle halves

    out = pl.pallas_call(
        _sa_kernel,
        out_shape=jax.ShapeDtypeStruct((b, c, hw), x.dtype),
        grid=grid,
        in_specs=[
            # the same input array is passed twice: first / second shuffle half of channels
            pl.BlockSpec((bb, 1, half, hw), lambda bi, ci: (bi, 0, ci, 0)),
            pl.BlockSpec((bb, 1, half, hw), lambda bi, ci: (bi, 1, ci, 0)),
            pl.BlockSpec((6, half, 1), lambda bi, ci: (0, ci, 0)),
        ],
        out_specs=pl.BlockSpec((bb, tb, hw), lambda bi, ci: (bi, ci, 0)),
        compiler_params=pltpu.CompilerParams(
            dimension_semantics=("parallel", "parallel"),
            vmem_limit_bytes=vmem_limit,
        ),
    )(x4, x4, p6)

    # (b, c, hw) row-major is exactly the channel-shuffled NCHW tensor -> free reshape.
    return out.reshape(b, c, h, w)


def sa_layer_reference(x, params, groups):
    """Pure-JAX reference mirroring the PyTorch forward (correctness check)."""
    b, c, h, w = x.shape
    cpg = c // groups
    ch = cpg // 2
    xr = x.reshape(b * groups, cpg, h, w)
    x0, x1 = xr[:, :ch], xr[:, ch:]
    cw = params["cweight"].reshape(1, ch, 1, 1)
    cb = params["cbias"].reshape(1, ch, 1, 1)
    sw = params["sweight"].reshape(1, ch, 1, 1)
    sb = params["sbias"].reshape(1, ch, 1, 1)
    gw = params["gn_weight"].reshape(1, ch, 1, 1)
    gb = params["gn_bias"].reshape(1, ch, 1, 1)

    xn = jnp.mean(x0, axis=(2, 3), keepdims=True)
    xn = cw * xn + cb
    xn = x0 * jax.nn.sigmoid(xn)

    mu = jnp.mean(x1, axis=(2, 3), keepdims=True)
    var = jnp.mean((x1 - mu) ** 2, axis=(2, 3), keepdims=True)
    xs = (x1 - mu) / jnp.sqrt(var + GN_EPS) * gw + gb
    xs = sw * xs + sb
    xs = x1 * jax.nn.sigmoid(xs)

    out = jnp.concatenate([xn, xs], axis=1).reshape(b, c, h, w)
    out = out.reshape(b, 2, c // 2, h, w).transpose(0, 2, 1, 3, 4).reshape(b, c, h, w)
    return out


if __name__ == "__main__":
    # Small shapes consistent with the module: channel=16, groups=4
    # => channel // (2*groups) = 2 parameters per branch.
    b, c, h, w = 2, 16, 8, 8
    groups = 4
    ch = c // (2 * groups)

    key = jax.random.PRNGKey(0)
    kx, k1, k2, k3, k4, k5, k6 = jax.random.split(key, 7)
    x = jax.random.normal(kx, (b, c, h, w), dtype=jnp.float32)

    # Deterministic synthetic parameter init (module defaults are zeros/ones;
    # small random values used to exercise the full compute path).
    params = {
        "cweight":   0.1 * jax.random.normal(k1, (ch, 1), dtype=jnp.float32),
        "cbias":     1.0 + 0.1 * jax.random.normal(k2, (ch, 1), dtype=jnp.float32),
        "sweight":   0.1 * jax.random.normal(k3, (ch, 1), dtype=jnp.float32),
        "sbias":     1.0 + 0.1 * jax.random.normal(k4, (ch, 1), dtype=jnp.float32),
        "gn_weight": 1.0 + 0.1 * jax.random.normal(k5, (ch, 1), dtype=jnp.float32),
        "gn_bias":   0.1 * jax.random.normal(k6, (ch, 1), dtype=jnp.float32),
    }

    out = jax.block_until_ready(sa_layer_forward(x, params, groups))
    ref = jax.block_until_ready(sa_layer_reference(x, params, groups))
    np.testing.assert_allclose(np.asarray(out), np.asarray(ref), rtol=1e-5, atol=1e-5)

    print("KERNEL_OK")
</pallas_src>

<mosaic_0001>
module attributes {stable_mosaic.version = 11 : i64} {
  func.func @_sa_kernel(%arg0: i32, %arg1: i32, %arg2: memref<2x1x8x64xf32, #tpu.memory_space<vmem>>, %arg3: memref<2x1x8x64xf32, #tpu.memory_space<vmem>>, %arg4: memref<6x8x1xf32, #tpu.memory_space<vmem>>, %arg5: memref<2x16x64xf32, #tpu.memory_space<vmem>>) attributes {dimension_semantics = [#tpu.dimension_semantics<parallel>, #tpu.dimension_semantics<parallel>], iteration_bounds = array<i64: 1, 1>, scalar_prefetch = 0 : i64, scratch_operands = 0 : i64, tpu.core_type = #tpu.core_type<tc>, window_params = [{transform_indices = @transform_0, window_bounds = array<i64: 2, 1, 8, 64>}, {transform_indices = @transform_1, window_bounds = array<i64: 2, 1, 8, 64>}, {transform_indices = @transform_2, window_bounds = array<i64: 6, 8, 1>}, {transform_indices = @transform_3, window_bounds = array<i64: 2, 16, 64>}]} {
    %c0 = arith.constant 0 : index
    %c0_0 = arith.constant 0 : index
    %c0_1 = arith.constant 0 : index
    %c0_2 = arith.constant 0 : index
    %0 = vector.load %arg2[%c0, %c0_0, %c0_1, %c0_2] : memref<2x1x8x64xf32, #tpu.memory_space<vmem>>, vector<2x1x8x64xf32>
    %1 = vector.shape_cast %0 : vector<2x1x8x64xf32> to vector<2x8x64xf32>
    %c0_3 = arith.constant 0 : index
    %c0_4 = arith.constant 0 : index
    %c0_5 = arith.constant 0 : index
    %2 = vector.load %arg4[%c0_3, %c0_4, %c0_5] : memref<6x8x1xf32, #tpu.memory_space<vmem>>, vector<1x8x1xf32>
    %3 = vector.shape_cast %2 : vector<1x8x1xf32> to vector<8x1xf32>
    %c1 = arith.constant 1 : index
    %c0_6 = arith.constant 0 : index
    %c0_7 = arith.constant 0 : index
    %4 = vector.load %arg4[%c1, %c0_6, %c0_7] : memref<6x8x1xf32, #tpu.memory_space<vmem>>, vector<1x8x1xf32>
    %5 = vector.shape_cast %4 : vector<1x8x1xf32> to vector<8x1xf32>
    %c2 = arith.constant 2 : index
    %c0_8 = arith.constant 0 : index
    %c0_9 = arith.constant 0 : index
    %6 = vector.load %arg4[%c2, %c0_8, %c0_9] : memref<6x8x1xf32, #tpu.memory_space<vmem>>, vector<1x8x1xf32>
    %7 = vector.shape_cast %6 : vector<1x8x1xf32> to vector<8x1xf32>
    %cst = arith.constant dense<0.000000e+00> : vector<2x8xf32>
    %8 = vector.multi_reduction <add>, %1, %cst [2] : vector<2x8x64xf32> to vector<2x8xf32>
    %9 = vector.shape_cast %8 : vector<2x8xf32> to vector<2x8x1xf32>
    %cst_10 = arith.constant 1.562500e-02 : f32
    %10 = vector.broadcast %cst_10 : f32 to vector<2x8x1xf32>
    %11 = arith.mulf %9, %10 : vector<2x8x1xf32>
    %12 = arith.mulf %1, %1 : vector<2x8x64xf32>
    %cst_11 = arith.constant dense<0.000000e+00> : vector<2x8xf32>
    %13 = vector.multi_reduction <add>, %12, %cst_11 [2] : vector<2x8x64xf32> to vector<2x8xf32>
    %14 = vector.shape_cast %13 : vector<2x8xf32> to vector<2x8x1xf32>
    %cst_12 = arith.constant 1.562500e-02 : f32
    %15 = vector.broadcast %cst_12 : f32 to vector<2x8x1xf32>
    %16 = arith.mulf %14, %15 : vector<2x8x1xf32>
    %17 = arith.mulf %11, %11 : vector<2x8x1xf32>
    %18 = arith.subf %16, %17 : vector<2x8x1xf32>
    %cst_13 = arith.constant 0.000000e+00 : f32
    %19 = vector.broadcast %cst_13 : f32 to vector<2x8x1xf32>
    %20 = arith.maximumf %18, %19 : vector<2x8x1xf32>
    %cst_14 = arith.constant 9.99999974E-6 : f32
    %21 = vector.broadcast %cst_14 : f32 to vector<2x8x1xf32>
    %22 = arith.addf %20, %21 : vector<2x8x1xf32>
    %23 = math.rsqrt %22 : vector<2x8x1xf32>
    %24 = vector.shape_cast %3 : vector<8x1xf32> to vector<1x8x1xf32>
    %25 = vector.broadcast %24 : vector<1x8x1xf32> to vector<2x8x1xf32>
    %26 = arith.mulf %25, %23 : vector<2x8x1xf32>
    %27 = vector.shape_cast %5 : vector<8x1xf32> to vector<1x8x1xf32>
    %28 = vector.broadcast %27 : vector<1x8x1xf32> to vector<2x8x1xf32>
    %29 = arith.mulf %28, %11 : vector<2x8x1xf32>
    %30 = vector.shape_cast %7 : vector<8x1xf32> to vector<1x8x1xf32>
    %31 = vector.broadcast %30 : vector<1x8x1xf32> to vector<2x8x1xf32>
    %32 = arith.addf %31, %29 : vector<2x8x1xf32>
    %33 = arith.mulf %26, %11 : vector<2x8x1xf32>
    %34 = arith.subf %32, %33 : vector<2x8x1xf32>
    %cst_15 = arith.constant 5.000000e-01 : f32
    %35 = vector.broadcast %cst_15 : f32 to vector<2x8x1xf32>
    %36 = arith.mulf %35, %26 : vector<2x8x1xf32>
    %cst_16 = arith.constant 5.000000e-01 : f32
    %37 = vector.broadcast %cst_16 : f32 to vector<2x8x1xf32>
    %38 = arith.mulf %37, %34 : vector<2x8x1xf32>
    %39 = vector.broadcast %36 : vector<2x8x1xf32> to vector<2x8x64xf32>
    %40 = arith.mulf %39, %1 : vector<2x8x64xf32>
    %41 = vector.broadcast %38 : vector<2x8x1xf32> to vector<2x8x64xf32>
    %42 = arith.addf %40, %41 : vector<2x8x64xf32>
    %43 = math.tanh %42 : vector<2x8x64xf32>
    %cst_17 = arith.constant 5.000000e-01 : f32
    %44 = vector.broadcast %cst_17 : f32 to vector<2x8x64xf32>
    %45 = arith.mulf %43, %44 : vector<2x8x64xf32>
    %cst_18 = arith.constant 5.000000e-01 : f32
    %46 = vector.broadcast %cst_18 : f32 to vector<2x8x64xf32>
    %47 = arith.addf %45, %46 : vector<2x8x64xf32>
    %48 = arith.mulf %1, %47 : vector<2x8x64xf32>
    %c0_19 = arith.constant 0 : index
    %c0_20 = arith.constant 0 : index
    %c0_21 = arith.constant 0 : index
    %c0_22 = arith.constant 0 : index
    %49 = vector.load %arg3[%c0_19, %c0_20, %c0_21, %c0_22] : memref<2x1x8x64xf32, #tpu.memory_space<vmem>>, vector<2x1x8x64xf32>
    %50 = vector.shape_cast %49 : vector<2x1x8x64xf32> to vector<2x8x64xf32>
    %c3 = arith.constant 3 : index
    %c0_23 = arith.constant 0 : index
    %c0_24 = arith.constant 0 : index
    %51 = vector.load %arg4[%c3, %c0_23, %c0_24] : memref<6x8x1xf32, #tpu.memory_space<vmem>>, vector<1x8x1xf32>
    %52 = vector.shape_cast %51 : vector<1x8x1xf32> to vector<8x1xf32>
    %c4 = arith.constant 4 : index
    %c0_25 = arith.constant 0 : index
    %c0_26 = arith.constant 0 : index
    %53 = vector.load %arg4[%c4, %c0_25, %c0_26] : memref<6x8x1xf32, #tpu.memory_space<vmem>>, vector<1x8x1xf32>
    %54 = vector.shape_cast %53 : vector<1x8x1xf32> to vector<8x1xf32>
    %c5 = arith.constant 5 : index
    %c0_27 = arith.constant 0 : index
    %c0_28 = arith.constant 0 : index
    %55 = vector.load %arg4[%c5, %c0_27, %c0_28] : memref<6x8x1xf32, #tpu.memory_space<vmem>>, vector<1x8x1xf32>
    %56 = vector.shape_cast %55 : vector<1x8x1xf32> to vector<8x1xf32>
    %cst_29 = arith.constant dense<0.000000e+00> : vector<2x8xf32>
    %57 = vector.multi_reduction <add>, %50, %cst_29 [2] : vector<2x8x64xf32> to vector<2x8xf32>
    %58 = vector.shape_cast %57 : vector<2x8xf32> to vector<2x8x1xf32>
    %cst_30 = arith.constant 1.562500e-02 : f32
    %59 = vector.broadcast %cst_30 : f32 to vector<2x8x1xf32>
    %60 = arith.mulf %58, %59 : vector<2x8x1xf32>
    %61 = arith.mulf %50, %50 : vector<2x8x64xf32>
    %cst_31 = arith.constant dense<0.000000e+00> : vector<2x8xf32>
    %62 = vector.multi_reduction <add>, %61, %cst_31 [2] : vector<2x8x64xf32> to vector<2x8xf32>
    %63 = vector.shape_cast %62 : vector<2x8xf32> to vector<2x8x1xf32>
    %cst_32 = arith.constant 1.562500e-02 : f32
    %64 = vector.broadcast %cst_32 : f32 to vector<2x8x1xf32>
    %65 = arith.mulf %63, %64 : vector<2x8x1xf32>
    %66 = arith.mulf %60, %60 : vector<2x8x1xf32>
    %67 = arith.subf %65, %66 : vector<2x8x1xf32>
    %cst_33 = arith.constant 0.000000e+00 : f32
    %68 = vector.broadcast %cst_33 : f32 to vector<2x8x1xf32>
    %69 = arith.maximumf %67, %68 : vector<2x8x1xf32>
    %cst_34 = arith.constant 9.99999974E-6 : f32
    %70 = vector.broadcast %cst_34 : f32 to vector<2x8x1xf32>
    %71 = arith.addf %69, %70 : vector<2x8x1xf32>
    %72 = math.rsqrt %71 : vector<2x8x1xf32>
    %73 = vector.shape_cast %52 : vector<8x1xf32> to vector<1x8x1xf32>
    %74 = vector.broadcast %73 : vector<1x8x1xf32> to vector<2x8x1xf32>
    %75 = arith.mulf %74, %72 : vector<2x8x1xf32>
    %76 = vector.shape_cast %54 : vector<8x1xf32> to vector<1x8x1xf32>
    %77 = vector.broadcast %76 : vector<1x8x1xf32> to vector<2x8x1xf32>
    %78 = arith.mulf %77, %60 : vector<2x8x1xf32>
    %79 = vector.shape_cast %56 : vector<8x1xf32> to vector<1x8x1xf32>
    %80 = vector.broadcast %79 : vector<1x8x1xf32> to vector<2x8x1xf32>
    %81 = arith.addf %80, %78 : vector<2x8x1xf32>
    %82 = arith.mulf %75, %60 : vector<2x8x1xf32>
    %83 = arith.subf %81, %82 : vector<2x8x1xf32>
    %cst_35 = arith.constant 5.000000e-01 : f32
    %84 = vector.broadcast %cst_35 : f32 to vector<2x8x1xf32>
    %85 = arith.mulf %84, %75 : vector<2x8x1xf32>
    %cst_36 = arith.constant 5.000000e-01 : f32
    %86 = vector.broadcast %cst_36 : f32 to vector<2x8x1xf32>
    %87 = arith.mulf %86, %83 : vector<2x8x1xf32>
    %88 = vector.broadcast %85 : vector<2x8x1xf32> to vector<2x8x64xf32>
    %89 = arith.mulf %88, %50 : vector<2x8x64xf32>
    %90 = vector.broadcast %87 : vector<2x8x1xf32> to vector<2x8x64xf32>
    %91 = arith.addf %89, %90 : vector<2x8x64xf32>
    %92 = math.tanh %91 : vector<2x8x64xf32>
    %cst_37 = arith.constant 5.000000e-01 : f32
    %93 = vector.broadcast %cst_37 : f32 to vector<2x8x64xf32>
    %94 = arith.mulf %92, %93 : vector<2x8x64xf32>
    %cst_38 = arith.constant 5.000000e-01 : f32
    %95 = vector.broadcast %cst_38 : f32 to vector<2x8x64xf32>
    %96 = arith.addf %94, %95 : vector<2x8x64xf32>
    %97 = arith.mulf %50, %96 : vector<2x8x64xf32>
    %98 = vector.shape_cast %48 : vector<2x8x64xf32> to vector<2x8x1x64xf32>
    %99 = vector.shape_cast %97 : vector<2x8x64xf32> to vector<2x8x1x64xf32>
    %100 = tpu.concatenate %98, %99 in 2 : vector<2x8x1x64xf32>, vector<2x8x1x64xf32> -> vector<2x8x2x64xf32>
    %101 = vector.shape_cast %100 : vector<2x8x2x64xf32> to vector<2x16x64xf32>
    %c0_39 = arith.constant 0 : index
    %c0_40 = arith.constant 0 : index
    %c0_41 = arith.constant 0 : index
    %102 = vector.load %arg5[%c0_39, %c0_40, %c0_41] : memref<2x16x64xf32, #tpu.memory_space<vmem>>, vector<2x16x64xf32>
    tpu.vector_store %arg5[%c0_39, %c0_40, %c0_41], %101 {strides = array<i32>} : memref<2x16x64xf32, #tpu.memory_space<vmem>>, vector<2x16x64xf32>,
    return
  }
  func.func @transform_0(%arg0: i32, %arg1: i32) -> (i32, i32, i32, i32) {
    %c0_i32 = arith.constant 0 : i32
    %c0_i32_0 = arith.constant 0 : i32
    %c0_i32_1 = arith.constant 0 : i32
    return %arg0, %c0_i32, %arg1, %c0_i32_0 : i32, i32, i32, i32
  }
  func.func @transform_1(%arg0: i32, %arg1: i32) -> (i32, i32, i32, i32) {
    %c1_i32 = arith.constant 1 : i32
    %c0_i32 = arith.constant 0 : i32
    %c0_i32_0 = arith.constant 0 : i32
    return %arg0, %c1_i32, %arg1, %c0_i32 : i32, i32, i32, i32
  }
  func.func @transform_2(%arg0: i32, %arg1: i32) -> (i32, i32, i32) {
    %c0_i32 = arith.constant 0 : i32
    %c0_i32_0 = arith.constant 0 : i32
    %c0_i32_1 = arith.constant 0 : i32
    return %c0_i32, %arg1, %c0_i32_0 : i32, i32, i32
  }
  func.func @transform_3(%arg0: i32, %arg1: i32) -> (i32, i32, i32) {
    %c0_i32 = arith.constant 0 : i32
    %c0_i32_0 = arith.constant 0 : i32
    return %arg0, %arg1, %c0_i32 : i32, i32, i32
  }
}

</mosaic_0001>

<llo_original>
// kernel: tpu_custom_call.1
$region0: #{tpu_custom_call.1}
  #allocation0 [shape = 'u32[]', space=smem, size = 0x4, offset = 0x4, fixed_abs, tag = 'smem constant byte address 0x4 - core index']
  #allocation1 [shape = 'u32[144,128]{1,0:T(1,128)}', space=vmem, size = 0x12000, scoped, tag = 'internal scratch']
  %s0 = inlined_call_operand.vmem [shape: f32[2,2,8,64], index: 0, kind: input, shape index: {}]
  %s1 = inlined_call_operand.hbm [shape: f32[2,2,8,64], index: 1, kind: input, shape index: {}]
  %s2 = inlined_call_operand.vmem [shape: f32[6,8,1], index: 2, kind: input, shape index: {}]
  %s3 = inlined_call_operand.hbm [shape: f32[2,16,64], index: 3, kind: output, shape index: {}]
  %s4 = sld [smem:[#allocation0]]
  $region64: #{tpu_custom_call.1} parent=0
    _
  %s6 = ssub.s32 1, %s4
  %s7 = scalar_select 0, %s6, %s4
  $region1: #{tpu_custom_call.1} parent=0
    #allocation2 [shape = 'u8[8192]{0}', space=vmem, size = 0x2000, scoped, tag = 'input window, operand 0, single buffered']
    #allocation3 [shape = 'u8[8192]{0}', space=vmem, size = 0x2000, scoped, tag = 'input window, operand 1, single buffered']
    #allocation4 [shape = 's32[1]{0}', space=sflag, size = 0x4, scoped, tag = 'scoped memory for tpu_custom_call.1']
    #allocation5 [shape = 's32[1]{0}', space=sflag, size = 0x4, scoped, tag = 'scoped memory for tpu_custom_call.1']
    #allocation6 [shape = 'u8[16384]{0}', space=vmem, size = 0x4000, scoped, tag = 'output window, operand 0, single buffered']
    %8 = vsyncpa [#allocation4], 0
    %9 = vsyncpa [#allocation5], 0
    // Predicated region
    $region2: #{tpu_custom_call.1} parent=1 // pred_check
      _
    $region3: #{tpu_custom_call.1} parent=1 // pred_check_branch
      %11 = sbr.rel (0) target = $region5
    $region4: #{tpu_custom_call.1} parent=1 // pred_region
      // Predicated region
      $region6: #{tpu_custom_call.1} parent=4 // pred_check
        _
      $region7: #{tpu_custom_call.1} parent=4 // pred_check_branch
        %13 = sbr.rel (0) target = $region9
      $region8: #{tpu_custom_call.1} parent=4 // pred_region
        // Predicated region
        $region10: #{tpu_custom_call.1} parent=8 // pred_check
          _
        $region11: #{tpu_custom_call.1} parent=8 // pred_check_branch
          %15 = sbr.rel (0) target = $region13
        $region12: #{tpu_custom_call.1} parent=8 // pred_region
          // Predicated region
          $region25: #{tpu_custom_call.1} parent=12 // pred_check
            _
          $region26: #{tpu_custom_call.1} parent=12 // pred_check_branch
            %32 = sbr.rel (0) target = $region28
          $region27: #{tpu_custom_call.1} parent=12 // pred_region
            loop: start=0, step=1, limit=1
            $region29: #{tpu_custom_call.1} parent=27 // loop_pre_header
              _
            $region30: #{tpu_custom_call.1} parent=27 // loop_header
              %s34 = sphi 0, %s38
              %p35 = scmp.ge.s32.totalorder %s34, 1
              %s39 = sphi %s0, %s0
              %s40 = sphi [#allocation2], [#allocation2]
            $region31: #{tpu_custom_call.1} parent=27 // loop_header_branch
              %37 = sbr.rel (%p35) target = $region35
            $region32: #{tpu_custom_call.1} parent=27 // loop_body
              %v41 = vld [vmem:[%s39] sm:$0xff]
              %42 = vst [vmem:[%s40] sm:$0xff] %v41
              %v43 = vld [vmem:[%s39 + $0x10] sm:$0xff]
              %44 = vst [vmem:[%s40 + $0x8] sm:$0xff] %v43
            $region33: #{tpu_custom_call.1} parent=27 // loop_footer
              %s38 = sadd.s32 1, %s34
            $region34: #{tpu_custom_call.1} parent=27 // loop_footer_branch
              %33 = sbr.rel target = $region30
            $region35: #{tpu_custom_call.1} parent=27 // loop_exit
              _
          $region28: #{tpu_custom_call.1} parent=12 // pred_fallthru
            _
          // Predicated region
          $region36: #{tpu_custom_call.1} parent=12 // pred_check
            _
          $region37: #{tpu_custom_call.1} parent=12 // pred_check_branch
            %46 = sbr.rel target = $region39
          $region38: #{tpu_custom_call.1} parent=12 // pred_region
            _
          $region39: #{tpu_custom_call.1} parent=12 // pred_fallthru
            _
        $region13: #{tpu_custom_call.1} parent=8 // pred_fallthru
          _
        // Predicated region
        $region14: #{tpu_custom_call.1} parent=8 // pred_check
          _
        $region15: #{tpu_custom_call.1} parent=8 // pred_check_branch
          %17 = sbr.rel target = $region17
        $region16: #{tpu_custom_call.1} parent=8 // pred_region
          loop: start=0, step=1, limit=1
          $region18: #{tpu_custom_call.1} parent=16 // loop_pre_header
            _
          $region19: #{tpu_custom_call.1} parent=16 // loop_header
            %s20 = sphi 0, %s24
            %p21 = scmp.ge.s32.totalorder %s20, 1
            %s25 = sphi %s0, %s0
            %s26 = sphi [#allocation2], [#allocation2]
          $region20: #{tpu_custom_call.1} parent=16 // loop_header_branch
            %23 = sbr.rel (%p21) target = $region24
          $region21: #{tpu_custom_call.1} parent=16 // loop_body
            %v27 = vld [vmem:[%s25] sm:$0xff]
            %28 = vst [vmem:[%s26] sm:$0xff] %v27
            %v29 = vld [vmem:[%s25 + $0x10] sm:$0xff]
            %30 = vst [vmem:[%s26 + $0x8] sm:$0xff] %v29
          $region22: #{tpu_custom_call.1} parent=16 // loop_footer
            %s24 = sadd.s32 1, %s20
          $region23: #{tpu_custom_call.1} parent=16 // loop_footer_branch
            %19 = sbr.rel target = $region19
          $region24: #{tpu_custom_call.1} parent=16 // loop_exit
            _
        $region17: #{tpu_custom_call.1} parent=8 // pred_fallthru
          _
      $region9: #{tpu_custom_call.1} parent=4 // pred_fallthru
        _
      %47 = vnop
    $region5: #{tpu_custom_call.1} parent=1 // pred_fallthru
      _
    // Predicated region
    $region40: #{tpu_custom_call.1} parent=1 // pred_check
      _
    $region41: #{tpu_custom_call.1} parent=1 // pred_check_branch
      %49 = sbr.rel (0) target = $region43
    $region42: #{tpu_custom_call.1} parent=1 // pred_region
      %s51 = ssub.s32 256, 256
      %52 = vsyncadd [#allocation4], %s51
      %s53 = scalar_lea.hbm %s1, 128
      %s54 = sshll.u32 [#allocation3], 4
      %s55 = int_to_ptr.vmem [resolvable:$true] %s54
      %60 = dma.hbm_to_vmem [thread:$0]  %s53, 256, %s55, [#allocation4], 256, 128, 8
    $region43: #{tpu_custom_call.1} parent=1 // pred_fallthru
      _
    // Predicated region
    $region44: #{tpu_custom_call.1} parent=1 // pred_check
      _
    $region45: #{tpu_custom_call.1} parent=1 // pred_check_branch
      %62 = sbr.rel (0) target = $region47
    $region46: #{tpu_custom_call.1} parent=1 // pred_region
      _
    $region47: #{tpu_custom_call.1} parent=1 // pred_fallthru
      _
    // Predicated region
    $region48: #{tpu_custom_call.1} parent=1 // pred_check
      _
    $region49: #{tpu_custom_call.1} parent=1 // pred_check_branch
      %64 = sbr.rel (0) target = $region51
    $region50: #{tpu_custom_call.1} parent=1 // pred_region
      _
    $region51: #{tpu_custom_call.1} parent=1 // pred_fallthru
      _
    // Predicated region
    $region52: #{tpu_custom_call.1} parent=1 // pred_check
      _
    $region53: #{tpu_custom_call.1} parent=1 // pred_check_branch
      %66 = sbr.rel (0) target = $region55
    $region54: #{tpu_custom_call.1} parent=1 // pred_region
      %67 = dma.done [#allocation4], 256
    $region55: #{tpu_custom_call.1} parent=1 // pred_fallthru
      _
    %v68 = vld [vmem:[#allocation2] sm:$0xff]
    %v69 = vld [vmem:[#allocation2 + $0x8] sm:$0xff]
    %v70 = vld [vmem:[%s2] sm:$0xff]
    %s71 = scalar_lea.vmem %s2, 8
    %v72 = vld [vmem:[%s71] sm:$0xff]
    %s73 = scalar_lea.vmem %s2, 16
    %v74 = vld [vmem:[%s73] sm:$0xff]
    %vm75 = vcmask 523264
    %v76 = vsel %vm75, %v68, 0.0
    %77 = vadd.xlane.f32.xlu0 %v76
    %v78 = vpop.xlane.xlu0 %77
    %v79 = vsel %vm75, %v69, 0.0
    %80 = vadd.xlane.f32.xlu0 %v79
    %v81 = vpop.xlane.xlu0 %80
    %v82 = vmul.f32 %v78, 0.015625
    %v83 = vmul.f32 %v81, 0.015625
    %v84 = vmul.f32 %v68, %v68
    %v85 = vmul.f32 %v69, %v69
    %v86 = vsel %vm75, %v84, 0.0
    %87 = vadd.xlane.f32.xlu0 %v86
    %v88 = vpop.xlane.xlu0 %87
    %v89 = vsel %vm75, %v85, 0.0
    %90 = vadd.xlane.f32.xlu0 %v89
    %v91 = vpop.xlane.xlu0 %90
    %v92 = vmul.f32 %v88, 0.015625
    %v93 = vmul.f32 %v91, 0.015625
    %v94 = vmul.f32 %v82, %v82
    %v95 = vmul.f32 %v83, %v83
    %v96 = vsub.f32 %v92, %v94
    %v97 = vsub.f32 %v93, %v95
    %v98 = vmax.f32 %v96, 0.0
    %v99 = vmax.f32 %v97, 0.0
    %v100 = vadd.f32 %v98, 1e-05
    %v101 = vadd.f32 %v99, 1e-05
    %v102 = vrsqrt.pop %v100
    %v103 = vrsqrt.pop %v101
    %v104 = vmul.f32 %v70, %v102
    %v105 = vmul.f32 %v70, %v103
    %v106 = vmul.f32 %v72, %v82
    %v107 = vmul.f32 %v72, %v83
    %v108 = vadd.f32 %v74, %v106
    %v109 = vadd.f32 %v74, %v107
    %v110 = vmul.f32 %v104, %v82
    %v111 = vmul.f32 %v105, %v83
    %v112 = vsub.f32 %v108, %v110
    %v113 = vsub.f32 %v109, %v111
    %v114 = vmul.f32 %v104, 0.5
    %v115 = vmul.f32 %v105, 0.5
    %v116 = vmul.f32 %v112, 0.5
    %v117 = vmul.f32 %v113, 0.5
    %119 = vset.pattern.permute.xlu0 0
    %120 = vperm.xlu0 %119, %v114
    %v121 = vpop.permute.xlu0 %120
    %124 = vset.pattern.permute.xlu0 0
    %125 = vperm.xlu0 %124, %v115
    %v126 = vpop.permute.xlu0 %125
    %v128 = vmul.f32 %v121, %v68
    %v129 = vmul.f32 %v126, %v69
    %131 = vset.pattern.permute.xlu0 0
    %132 = vperm.xlu0 %131, %v116
    %v133 = vpop.permute.xlu0 %132
    %136 = vset.pattern.permute.xlu0 0
    %137 = vperm.xlu0 %136, %v117
    %v138 = vpop.permute.xlu0 %137
    %v140 = vadd.f32 %v128, %v133
    %v141 = vadd.f32 %v129, %v138
    %v142 = vtanh.pop %v140
    %v143 = vtanh.pop %v141
    %v144 = vmul.f32 %v142, 0.5
    %v145 = vmul.f32 %v143, 0.5
    %v146 = vadd.f32 %v144, 0.5
    %v147 = vadd.f32 %v145, 0.5
    %v148 = vmul.f32 %v68, %v146
    %v149 = vmul.f32 %v69, %v147
    %v150 = vld [vmem:[#allocation3] sm:$0xff]
    %v151 = vld [vmem:[#allocation3 + $0x8] sm:$0xff]
    %s152 = scalar_lea.vmem %s2, 24
    %v153 = vld [vmem:[%s152] sm:$0xff]
    %s154 = scalar_lea.vmem %s2, 32
    %v155 = vld [vmem:[%s154] sm:$0xff]
    %s156 = scalar_lea.vmem %s2, 40
    %v157 = vld [vmem:[%s156] sm:$0xff]
    %v158 = vsel %vm75, %v150, 0.0
    %159 = vadd.xlane.f32.xlu0 %v158
    %v160 = vpop.xlane.xlu0 %159
    %v161 = vsel %vm75, %v151, 0.0
    %162 = vadd.xlane.f32.xlu0 %v161
    %v163 = vpop.xlane.xlu0 %162
    %v164 = vmul.f32 %v160, 0.015625
    %v165 = vmul.f32 %v163, 0.015625
    %v166 = vmul.f32 %v150, %v150
    %v167 = vmul.f32 %v151, %v151
    %v168 = vsel %vm75, %v166, 0.0
    %169 = vadd.xlane.f32.xlu0 %v168
    %v170 = vpop.xlane.xlu0 %169
    %v171 = vsel %vm75, %v167, 0.0
    %172 = vadd.xlane.f32.xlu0 %v171
    %v173 = vpop.xlane.xlu0 %172
    %v174 = vmul.f32 %v170, 0.015625
    %v175 = vmul.f32 %v173, 0.015625
    %v176 = vmul.f32 %v164, %v164
    %v177 = vmul.f32 %v165, %v165
    %v178 = vsub.f32 %v174, %v176
    %v179 = vsub.f32 %v175, %v177
    %v180 = vmax.f32 %v178, 0.0
    %v181 = vmax.f32 %v179, 0.0
    %v182 = vadd.f32 %v180, 1e-05
    %v183 = vadd.f32 %v181, 1e-05
    %v184 = vrsqrt.pop %v182
    %v185 = vrsqrt.pop %v183
    %v186 = vmul.f32 %v153, %v184
    %v187 = vmul.f32 %v153, %v185
    %v188 = vmul.f32 %v155, %v164
    %v189 = vmul.f32 %v155, %v165
    %v190 = vadd.f32 %v157, %v188
    %v191 = vadd.f32 %v157, %v189
    %v192 = vmul.f32 %v186, %v164
    %v193 = vmul.f32 %v187, %v165
    %v194 = vsub.f32 %v190, %v192
    %v195 = vsub.f32 %v191, %v193
    %v196 = vmul.f32 %v186, 0.5
    %v197 = vmul.f32 %v187, 0.5
    %v198 = vmul.f32 %v194, 0.5
    %v199 = vmul.f32 %v195, 0.5
    %201 = vset.pattern.permute.xlu0 0
    %202 = vperm.xlu0 %201, %v196
    %v203 = vpop.permute.xlu0 %202
    %206 = vset.pattern.permute.xlu0 0
    %207 = vperm.xlu0 %206, %v197
    %v208 = vpop.permute.xlu0 %207
    %v210 = vmul.f32 %v203, %v150
    %v211 = vmul.f32 %v208, %v151
    %213 = vset.pattern.permute.xlu0 0
    %214 = vperm.xlu0 %213, %v198
    %v215 = vpop.permute.xlu0 %214
    %218 = vset.pattern.permute.xlu0 0
    %219 = vperm.xlu0 %218, %v199
    %v220 = vpop.permute.xlu0 %219
    %v222 = vadd.f32 %v210, %v215
    %v223 = vadd.f32 %v211, %v220
    %v224 = vtanh.pop %v222
    %v225 = vtanh.pop %v223
    %v226 = vmul.f32 %v224, 0.5
    %v227 = vmul.f32 %v225, 0.5
    %v228 = vadd.f32 %v226, 0.5
    %v229 = vadd.f32 %v227, 0.5
    %v230 = vmul.f32 %v150, %v228
    %v231 = vmul.f32 %v151, %v229
    %v234 = vcombine.high %v148, %v148
    %v236 = vunpack.c.l.s4 1966171168
    %v237 = vunpack.c.0.s8 %v236
    %v238 = vlaneseq
    %v239 = vshrl.u32 %v238, 7
    %v240 = vsub.s32 %v237, %v239
    %v241 = vrot.slane %v148, %v240
    %v243 = vunpack.c.l.s4 1966171168
    %v244 = vunpack.c.0.s8 %v243
    %v245 = vlaneseq
    %v246 = vshrl.u32 %v245, 7
    %v247 = vsub.s32 %v244, %v246
    %v248 = vrot.slane %v234, %v247
    %v249 = vcombine.high %v241, %v241
    %v250 = vcombine.high %v248, %v248
    %v252 = vunpack.c.l.s4 1966171168
    %v253 = vunpack.c.0.s8 %v252
    %v254 = vlaneseq
    %v255 = vshrl.u32 %v254, 7
    %v256 = vsub.s32 %v253, %v255
    %v257 = vrot.slane %v241, %v256
    %v259 = vunpack.c.l.s4 1966171168
    %v260 = vunpack.c.0.s8 %v259
    %v261 = vlaneseq
    %v262 = vshrl.u32 %v261, 7
    %v263 = vsub.s32 %v260, %v262
    %v264 = vrot.slane %v248, %v263
    %v266 = vunpack.c.l.s4 1966171168
    %v267 = vunpack.c.0.s8 %v266
    %v268 = vlaneseq
    %v269 = vshrl.u32 %v268, 7
    %v270 = vsub.s32 %v267, %v269
    %v271 = vrot.slane %v249, %v270
    %v273 = vunpack.c.l.s4 1966171168
    %v274 = vunpack.c.0.s8 %v273
    %v275 = vlaneseq
    %v276 = vshrl.u32 %v275, 7
    %v277 = vsub.s32 %v274, %v276
    %v278 = vrot.slane %v250, %v277
    %v279 = vcombine.high %v257, %v257
    %v280 = vcombine.high %v264, %v264
    %v281 = vcombine.high %v271, %v271
    %v282 = vcombine.high %v278, %v278
    %v283 = vcombine.high %v149, %v149
    %v285 = vunpack.c.l.s4 1966171168
    %v286 = vunpack.c.0.s8 %v285
    %v287 = vlaneseq
    %v288 = vshrl.u32 %v287, 7
    %v289 = vsub.s32 %v286, %v288
    %v290 = vrot.slane %v149, %v289
    %v292 = vunpack.c.l.s4 1966171168
    %v293 = vunpack.c.0.s8 %v292
    %v294 = vlaneseq
    %v295 = vshrl.u32 %v294, 7
    %v296 = vsub.s32 %v293, %v295
    %v297 = vrot.slane %v283, %v296
    %v298 = vcombine.high %v290, %v290
    %v299 = vcombine.high %v297, %v297
    %v301 = vunpack.c.l.s4 1966171168
    %v302 = vunpack.c.0.s8 %v301
    %v303 = vlaneseq
    %v304 = vshrl.u32 %v303, 7
    %v305 = vsub.s32 %v302, %v304
    %v306 = vrot.slane %v290, %v305
    %v308 = vunpack.c.l.s4 1966171168
    %v309 = vunpack.c.0.s8 %v308
    %v310 = vlaneseq
    %v311 = vshrl.u32 %v310, 7
    %v312 = vsub.s32 %v309, %v311
    %v313 = vrot.slane %v297, %v312
    %v315 = vunpack.c.l.s4 1966171168
    %v316 = vunpack.c.0.s8 %v315
    %v317 = vlaneseq
    %v318 = vshrl.u32 %v317, 7
    %v319 = vsub.s32 %v316, %v318
    %v320 = vrot.slane %v298, %v319
    %v322 = vunpack.c.l.s4 1966171168
    %v323 = vunpack.c.0.s8 %v322
    %v324 = vlaneseq
    %v325 = vshrl.u32 %v324, 7
    %v326 = vsub.s32 %v323, %v325
    %v327 = vrot.slane %v299, %v326
    %v328 = vcombine.high %v306, %v306
    %v329 = vcombine.high %v313, %v313
    %v330 = vcombine.high %v320, %v320
    %v331 = vcombine.high %v327, %v327
    %v350 = vcombine.high %v230, %v230
    %v352 = vunpack.c.l.s4 1966171168
    %v353 = vunpack.c.0.s8 %v352
    %v354 = vlaneseq
    %v355 = vshrl.u32 %v354, 7
    %v356 = vsub.s32 %v353, %v355
    %v357 = vrot.slane %v230, %v356
    %v359 = vunpack.c.l.s4 1966171168
    %v360 = vunpack.c.0.s8 %v359
    %v361 = vlaneseq
    %v362 = vshrl.u32 %v361, 7
    %v363 = vsub.s32 %v360, %v362
    %v364 = vrot.slane %v350, %v363
    %v365 = vcombine.high %v357, %v357
    %v366 = vcombine.high %v364, %v364
    %v368 = vunpack.c.l.s4 1966171168
    %v369 = vunpack.c.0.s8 %v368
    %v370 = vlaneseq
    %v371 = vshrl.u32 %v370, 7
    %v372 = vsub.s32 %v369, %v371
    %v373 = vrot.slane %v357, %v372
    %v375 = vunpack.c.l.s4 1966171168
    %v376 = vunpack.c.0.s8 %v375
    %v377 = vlaneseq
    %v378 = vshrl.u32 %v377, 7
    %v379 = vsub.s32 %v376, %v378
    %v380 = vrot.slane %v364, %v379
    %v382 = vunpack.c.l.s4 1966171168
    %v383 = vunpack.c.0.s8 %v382
    %v384 = vlaneseq
    %v385 = vshrl.u32 %v384, 7
    %v386 = vsub.s32 %v383, %v385
    %v387 = vrot.slane %v365, %v386
    %v389 = vunpack.c.l.s4 1966171168
    %v390 = vunpack.c.0.s8 %v389
    %v391 = vlaneseq
    %v392 = vshrl.u32 %v391, 7
    %v393 = vsub.s32 %v390, %v392
    %v394 = vrot.slane %v366, %v393
    %v395 = vcombine.high %v373, %v373
    %v396 = vcombine.high %v380, %v380
    %v397 = vcombine.high %v387, %v387
    %v398 = vcombine.high %v394, %v394
    %v399 = vcombine.high %v231, %v231
    %v401 = vunpack.c.l.s4 1966171168
    %v402 = vunpack.c.0.s8 %v401
    %v403 = vlaneseq
    %v404 = vshrl.u32 %v403, 7
    %v405 = vsub.s32 %v402, %v404
    %v406 = vrot.slane %v231, %v405
    %v408 = vunpack.c.l.s4 1966171168
    %v409 = vunpack.c.0.s8 %v408
    %v410 = vlaneseq
    %v411 = vshrl.u32 %v410, 7
    %v412 = vsub.s32 %v409, %v411
    %v413 = vrot.slane %v399, %v412
    %v414 = vcombine.high %v406, %v406
    %v415 = vcombine.high %v413, %v413
    %v417 = vunpack.c.l.s4 1966171168
    %v418 = vunpack.c.0.s8 %v417
    %v419 = vlaneseq
    %v420 = vshrl.u32 %v419, 7
    %v421 = vsub.s32 %v418, %v420
    %v422 = vrot.slane %v406, %v421
    %v424 = vunpack.c.l.s4 1966171168
    %v425 = vunpack.c.0.s8 %v424
    %v426 = vlaneseq
    %v427 = vshrl.u32 %v426, 7
    %v428 = vsub.s32 %v425, %v427
    %v429 = vrot.slane %v413, %v428
    %v431 = vunpack.c.l.s4 1966171168
    %v432 = vunpack.c.0.s8 %v431
    %v433 = vlaneseq
    %v434 = vshrl.u32 %v433, 7
    %v435 = vsub.s32 %v432, %v434
    %v436 = vrot.slane %v414, %v435
    %v438 = vunpack.c.l.s4 1966171168
    %v439 = vunpack.c.0.s8 %v438
    %v440 = vlaneseq
    %v441 = vshrl.u32 %v440, 7
    %v442 = vsub.s32 %v439, %v441
    %v443 = vrot.slane %v415, %v442
    %v444 = vcombine.high %v422, %v422
    %v445 = vcombine.high %v429, %v429
    %v446 = vcombine.high %v436, %v436
    %v447 = vcombine.high %v443, %v443
    %v448 = vlaneseq
    %v449 = vshrl.u32 %v448, 7
    %v450 = vsub.s32 0, %v449
    %v451 = vrot.slane %v373, %v450
    %v452 = vlaneseq
    %v453 = vshrl.u32 %v452, 7
    %v454 = vsub.s32 0, %v453
    %v455 = vrot.slane %v387, %v454
    %v456 = vlaneseq
    %v457 = vshrl.u32 %v456, 7
    %v458 = vsub.s32 0, %v457
    %v459 = vrot.slane %v395, %v458
    %v460 = vlaneseq
    %v461 = vshrl.u32 %v460, 7
    %v462 = vsub.s32 0, %v461
    %v463 = vrot.slane %v397, %v462
    %v464 = vlaneseq
    %v465 = vshrl.u32 %v464, 7
    %v466 = vsub.s32 0, %v465
    %v467 = vrot.slane %v380, %v466
    %v468 = vlaneseq
    %v469 = vshrl.u32 %v468, 7
    %v470 = vsub.s32 0, %v469
    %v471 = vrot.slane %v394, %v470
    %v472 = vlaneseq
    %v473 = vshrl.u32 %v472, 7
    %v474 = vsub.s32 0, %v473
    %v475 = vrot.slane %v396, %v474
    %v476 = vlaneseq
    %v477 = vshrl.u32 %v476, 7
    %v478 = vsub.s32 0, %v477
    %v479 = vrot.slane %v398, %v478
    %v480 = vlaneseq
    %v481 = vshrl.u32 %v480, 7
    %v482 = vsub.s32 0, %v481
    %v483 = vrot.slane %v422, %v482
    %v484 = vlaneseq
    %v485 = vshrl.u32 %v484, 7
    %v486 = vsub.s32 0, %v485
    %v487 = vrot.slane %v436, %v486
    %v488 = vlaneseq
    %v489 = vshrl.u32 %v488, 7
    %v490 = vsub.s32 0, %v489
    %v491 = vrot.slane %v444, %v490
    %v492 = vlaneseq
    %v493 = vshrl.u32 %v492, 7
    %v494 = vsub.s32 0, %v493
    %v495 = vrot.slane %v446, %v494
    %v496 = vlaneseq
    %v497 = vshrl.u32 %v496, 7
    %v498 = vsub.s32 0, %v497
    %v499 = vrot.slane %v429, %v498
    %v500 = vlaneseq
    %v501 = vshrl.u32 %v500, 7
    %v502 = vsub.s32 0, %v501
    %v503 = vrot.slane %v443, %v502
    %v504 = vlaneseq
    %v505 = vshrl.u32 %v504, 7
    %v506 = vsub.s32 0, %v505
    %v507 = vrot.slane %v445, %v506
    %v508 = vlaneseq
    %v509 = vshrl.u32 %v508, 7
    %v510 = vsub.s32 0, %v509
    %v511 = vrot.slane %v447, %v510
    %vm528 = vcmask 1040384
    %v529 = vsel %vm528, %v257, %v451
    %v530 = vsel %vm528, %v271, %v455
    %v531 = vsel %vm528, %v279, %v459
    %v532 = vsel %vm528, %v281, %v463
    %v533 = vsel %vm528, %v264, %v467
    %v534 = vsel %vm528, %v278, %v471
    %v535 = vsel %vm528, %v280, %v475
    %v536 = vsel %vm528, %v282, %v479
    %v537 = vsel %vm528, %v306, %v483
    %v538 = vsel %vm528, %v320, %v487
    %v539 = vsel %vm528, %v328, %v491
    %v540 = vsel %vm528, %v330, %v495
    %v541 = vsel %vm528, %v313, %v499
    %v542 = vsel %vm528, %v327, %v503
    %v543 = vsel %vm528, %v329, %v507
    %v544 = vsel %vm528, %v331, %v511
    %v561 = vcombine.low %v529, %v530
    %v562 = vcombine.low %v531, %v532
    %v564 = vunpack.c.l.s4 1983009808
    %v565 = vunpack.c.0.s8 %v564
    %v566 = vlaneseq
    %v567 = vshrl.u32 %v566, 7
    %v568 = vsub.s32 %v565, %v567
    %v569 = vrot.slane %v561, %v568
    %v571 = vunpack.c.l.s4 1983009808
    %v572 = vunpack.c.0.s8 %v571
    %v573 = vlaneseq
    %v574 = vshrl.u32 %v573, 7
    %v575 = vsub.s32 %v572, %v574
    %v576 = vrot.slane %v562, %v575
    %v577 = vcombine.low %v569, %v576
    %v578 = vcombine.low %v533, %v534
    %v579 = vcombine.low %v535, %v536
    %v581 = vunpack.c.l.s4 1983009808
    %v582 = vunpack.c.0.s8 %v581
    %v583 = vlaneseq
    %v584 = vshrl.u32 %v583, 7
    %v585 = vsub.s32 %v582, %v584
    %v586 = vrot.slane %v578, %v585
    %v588 = vunpack.c.l.s4 1983009808
    %v589 = vunpack.c.0.s8 %v588
    %v590 = vlaneseq
    %v591 = vshrl.u32 %v590, 7
    %v592 = vsub.s32 %v589, %v591
    %v593 = vrot.slane %v579, %v592
    %v594 = vcombine.low %v586, %v593
    %v595 = vcombine.low %v537, %v538
    %v596 = vcombine.low %v539, %v540
    %v598 = vunpack.c.l.s4 1983009808
    %v599 = vunpack.c.0.s8 %v598
    %v600 = vlaneseq
    %v601 = vshrl.u32 %v600, 7
    %v602 = vsub.s32 %v599, %v601
    %v603 = vrot.slane %v595, %v602
    %v605 = vunpack.c.l.s4 1983009808
    %v606 = vunpack.c.0.s8 %v605
    %v607 = vlaneseq
    %v608 = vshrl.u32 %v607, 7
    %v609 = vsub.s32 %v606, %v608
    %v610 = vrot.slane %v596, %v609
    %v611 = vcombine.low %v603, %v610
    %v612 = vcombine.low %v541, %v542
    %v613 = vcombine.low %v543, %v544
    %v615 = vunpack.c.l.s4 1983009808
    %v616 = vunpack.c.0.s8 %v615
    %v617 = vlaneseq
    %v618 = vshrl.u32 %v617, 7
    %v619 = vsub.s32 %v616, %v618
    %v620 = vrot.slane %v612, %v619
    %v622 = vunpack.c.l.s4 1983009808
    %v623 = vunpack.c.0.s8 %v622
    %v624 = vlaneseq
    %v625 = vshrl.u32 %v624, 7
    %v626 = vsub.s32 %v623, %v625
    %v627 = vrot.slane %v613, %v626
    %v628 = vcombine.low %v620, %v627
    %633 = vst.msk [vmem:[#allocation6] sm:$0xff] %vm75, %v577
    %634 = vst.msk [vmem:[#allocation6 + $0x8] sm:$0xff] %vm75, %v594
    %635 = vst.msk [vmem:[#allocation6 + $0x10] sm:$0xff] %vm75, %v611
    %636 = vst.msk [vmem:[#allocation6 + $0x18] sm:$0xff] %vm75, %v628
    // Predicated region
    $region56: #{tpu_custom_call.1} parent=1 // pred_check
      _
    $region57: #{tpu_custom_call.1} parent=1 // pred_check_branch
      %638 = sbr.rel (0) target = $region59
    $region58: #{tpu_custom_call.1} parent=1 // pred_region
      %s640 = ssub.s32 512, 512
      %641 = vsyncadd [#allocation5], %s640
      %s642 = sshll.u32 [#allocation6], 4
      %s643 = int_to_ptr.vmem [resolvable:$true] %s642
      %648 = dma.vmem_to_hbm [thread:$0]  %s643, 512, %s3, [#allocation5], 128, 128, 8
    $region59: #{tpu_custom_call.1} parent=1 // pred_fallthru
      _
    // Predicated region
    $region60: #{tpu_custom_call.1} parent=1 // pred_check
      _
    $region61: #{tpu_custom_call.1} parent=1 // pred_check_branch
      %650 = sbr.rel (0) target = $region63
    $region62: #{tpu_custom_call.1} parent=1 // pred_region
      %651 = dma.done [#allocation5], 512
    $region63: #{tpu_custom_call.1} parent=1 // pred_fallthru
      _
    %652 = vsyncpa [#allocation4], 1
    %653 = vsyncpa [#allocation5], 1

</llo_original>
